<compile_context>
chip_gen: v7x
topology: tpu7x:2x2x1
jax: 0.10.0
libtpu: 0.0.40
codegen_flags: <defaults>
</compile_context>

<pallas_src>
import functools
import math

import jax
import jax.numpy as jnp
from jax.experimental import pallas as pl
from jax.experimental.pallas import tpu as pltpu

EPS = 1e-07
LOG_STD_MAX = 2.0
LOG_STD_MIN = -5.0
MEAN_MAX = 9.0
MEAN_MIN = -9.0

HIDDEN = 256
_HALF_LOG_2PI = 0.5 * math.log(2.0 * math.pi)
_LOG_2 = math.log(2.0)


def _round_up(x, m):
    return ((x + m - 1) // m) * m


def actor_kernel(state_ref, eps_ref,
                 w1_ref, b1_ref, w2_ref, b2_ref,
                 wh_ref, bh_ref,
                 action_ref, mode_ref, logp_ref, *, action_dim):
    A = action_dim
    x = state_ref[...]                                      # (TB, S) bf16 (cast in wrapper)

    # fc1 + relu  (bf16 MXU inputs, f32 accumulate); store activation as bf16
    h1 = jnp.dot(x, w1_ref[...], preferred_element_type=jnp.float32) + b1_ref[...]
    h1 = jnp.maximum(h1, 0.0).astype(jnp.bfloat16)

    # fc2 + relu
    h2 = jnp.dot(h1, w2_ref[...], preferred_element_type=jnp.float32) + b2_ref[...]
    h2 = jnp.maximum(h2, 0.0).astype(jnp.bfloat16)

    # fused mu / log_sigma heads: one (TB, 2A) matmul, then lane slice
    heads = jnp.dot(h2, wh_ref[...], preferred_element_type=jnp.float32) + bh_ref[...]
    mu = jnp.clip(heads[:, :A], MEAN_MIN, MEAN_MAX)
    log_sigma = jnp.clip(heads[:, A:2 * A], LOG_STD_MIN, LOG_STD_MAX)
    sigma = jnp.exp(log_sigma)

    # rsample from TransformedDistribution(Normal(mu, sigma), TanhTransform(cache_size=1))
    eps = eps_ref[...]                                      # (TB, A) f32
    pre = mu + sigma * eps                                  # cached pre-tanh value
    action = jnp.tanh(pre)

    # Normal.log_prob(pre): ((pre - mu)/sigma)**2 == eps**2 exactly (rsample identity)
    normal_lp = -0.5 * (eps * eps) - log_sigma - _HALF_LOG_2PI
    # TanhTransform.log_abs_det_jacobian = 2*(log(2) - x - softplus(-2x)), stable softplus
    z = -2.0 * pre
    softplus_z = jnp.maximum(z, 0.0) + jnp.log1p(jnp.exp(-jnp.abs(z)))
    log_det = 2.0 * (_LOG_2 - pre - softplus_z)
    lp = normal_lp - log_det                                # (TB, A) per-dim log-prob

    action_ref[...] = action
    mode_ref[...] = jnp.tanh(mu)
    logp_ref[...] = jnp.sum(lp, axis=-1, keepdims=True)     # summed in-kernel (TB, 1)


def prepare_actor_params(params):
    """One-time weight prep: fuse mu/sigma heads and cast matmul weights to bf16.

    Call at init / param-update time, NOT in the forward path.
    """
    w_head = jnp.concatenate([params["wmu"], params["wsig"]], axis=1)   # (H, 2A)
    b_head = jnp.concatenate([params["bmu"], params["bsig"]], axis=1)   # (1, 2A)
    return dict(
        w1=params["w1"].astype(jnp.bfloat16), b1=params["b1"],
        w2=params["w2"].astype(jnp.bfloat16), b2=params["b2"],
        w_head=w_head.astype(jnp.bfloat16), b_head=b_head,
    )


def actor_forward(state, eps, prepared, *, tile_b=512):
    """state: (B, S) f32, eps: (B, A) f32, prepared: output of prepare_actor_params."""
    B, S = state.shape
    H = prepared["w1"].shape[1]
    A = prepared["w_head"].shape[1] // 2

    # Cast state to bf16 for the MXU (eps stays f32: it feeds the log-prob math).
    state = state.astype(jnp.bfloat16)

    # Batch tile: multiple of 16 (bf16 sublane packing).  Aim for >= 2 grid steps
    # so v7x's two TensorCores can both be used via the "parallel" batch axis.
    TB = max(16, min(tile_b, _round_up((B + 1) // 2, 16)))
    B_pad = _round_up(B, TB)
    if B_pad != B:
        pad_rows = B_pad - B
        state = jnp.pad(state, ((0, pad_rows), (0, 0)))
        eps = jnp.pad(eps, ((0, pad_rows), (0, 0)))

    grid = (B_pad // TB,)
    kernel = functools.partial(actor_kernel, action_dim=A)

    weight_bytes = (S * H + H * H + H * 2 * A) * 2 + (2 * H + 2 * A) * 4
    flops = 2 * B_pad * (S * H + H * H + H * 2 * A)
    transcendentals = 5 * B_pad * A          # exp(log_sigma), tanh x2, exp+log1p in softplus
    bytes_accessed = (B_pad * S * 2 + B_pad * A * 4          # bf16 state, f32 eps
                      + weight_bytes
                      + B_pad * (2 * A + 1) * 4)              # action + mode + logp

    # Honest VMEM footprint (few MB at TB=512); keep headroom on v7x's 64 MiB VMEM.
    vmem_limit = (16 if TB <= 1024 else 32) * 1024 * 1024

    action, mode, logp = pl.pallas_call(
        kernel,
        out_shape=(
            jax.ShapeDtypeStruct((B_pad, A), jnp.float32),    # action
            jax.ShapeDtypeStruct((B_pad, A), jnp.float32),    # tanh(mu) mode
            jax.ShapeDtypeStruct((B_pad, 1), jnp.float32),    # summed log-prob
        ),
        grid=grid,
        in_specs=[
            pl.BlockSpec((TB, S), lambda i: (i, 0)),          # state tile (bf16)
            pl.BlockSpec((TB, A), lambda i: (i, 0)),          # eps tile (f32)
            pl.BlockSpec((S, H), lambda i: (0, 0)),           # w1 (VMEM-resident)
            pl.BlockSpec((1, H), lambda i: (0, 0)),           # b1
            pl.BlockSpec((H, H), lambda i: (0, 0)),           # w2
            pl.BlockSpec((1, H), lambda i: (0, 0)),           # b2
            pl.BlockSpec((H, 2 * A), lambda i: (0, 0)),       # fused head weight
            pl.BlockSpec((1, 2 * A), lambda i: (0, 0)),       # fused head bias
        ],
        out_specs=(
            pl.BlockSpec((TB, A), lambda i: (i, 0)),
            pl.BlockSpec((TB, A), lambda i: (i, 0)),
            pl.BlockSpec((TB, 1), lambda i: (i, 0)),
        ),
        compiler_params=pltpu.CompilerParams(
            dimension_semantics=("parallel",),
            vmem_limit_bytes=vmem_limit,
        ),
        cost_estimate=pl.CostEstimate(
            flops=int(flops),
            transcendentals=int(transcendentals),
            bytes_accessed=int(bytes_accessed),
        ),
    )(state, eps,
      prepared["w1"], prepared["b1"],
      prepared["w2"], prepared["b2"],
      prepared["w_head"], prepared["b_head"])

    return action[:B], logp[:B, 0], mode[:B]


def init_params(key, state_dim, action_dim):
    """Deterministic PyTorch-Linear-style init (uniform +/- 1/sqrt(fan_in))."""
    def linear(k, fan_in, fan_out):
        kw, kb = jax.random.split(k)
        bound = 1.0 / math.sqrt(fan_in)
        w = jax.random.uniform(kw, (fan_in, fan_out), jnp.float32, -bound, bound)
        b = jax.random.uniform(kb, (1, fan_out), jnp.float32, -bound, bound)
        return w, b

    k1, k2, k3, k4 = jax.random.split(key, 4)
    w1, b1 = linear(k1, state_dim, HIDDEN)
    w2, b2 = linear(k2, HIDDEN, HIDDEN)
    wmu, bmu = linear(k3, HIDDEN, action_dim)
    wsig, bsig = linear(k4, HIDDEN, action_dim)
    return dict(w1=w1, b1=b1, w2=w2, b2=b2,
                wmu=wmu, bmu=bmu, wsig=wsig, bsig=bsig)


if __name__ == "__main__":
    B, STATE_DIM, ACTION_DIM = 8, 16, 8

    key = jax.random.PRNGKey(0)
    k_params, k_state, k_eps = jax.random.split(key, 3)

    params = init_params(k_params, STATE_DIM, ACTION_DIM)
    prepared = prepare_actor_params(params)               # one-time weight prep
    state = jax.random.normal(k_state, (B, STATE_DIM), jnp.float32)
    eps = jax.random.normal(k_eps, (B, ACTION_DIM), jnp.float32)

    action, logp_pi, a_tanh_mode = actor_forward(state, eps, prepared)
    jax.block_until_ready((action, logp_pi, a_tanh_mode))

    assert action.shape == (B, ACTION_DIM)
    assert logp_pi.shape == (B,)
    assert a_tanh_mode.shape == (B, ACTION_DIM)
    assert bool(jnp.all(jnp.isfinite(action)))
    assert bool(jnp.all(jnp.isfinite(logp_pi)))
    assert bool(jnp.all(jnp.isfinite(a_tanh_mode)))
    assert bool(jnp.all(jnp.abs(action) <= 1.0))
    print("KERNEL_OK")
</pallas_src>

<mosaic_0001>
module attributes {stable_mosaic.version = 11 : i64} {
  func.func @actor_kernel(%arg0: i32, %arg1: memref<16x16xbf16, #tpu.memory_space<vmem>>, %arg2: memref<16x8xf32, #tpu.memory_space<vmem>>, %arg3: memref<16x256xbf16, #tpu.memory_space<vmem>>, %arg4: memref<1x256xf32, #tpu.memory_space<vmem>>, %arg5: memref<256x256xbf16, #tpu.memory_space<vmem>>, %arg6: memref<1x256xf32, #tpu.memory_space<vmem>>, %arg7: memref<256x16xbf16, #tpu.memory_space<vmem>>, %arg8: memref<1x16xf32, #tpu.memory_space<vmem>>, %arg9: memref<16x8xf32, #tpu.memory_space<vmem>>, %arg10: memref<16x8xf32, #tpu.memory_space<vmem>>, %arg11: memref<16x1xf32, #tpu.memory_space<vmem>>) attributes {dimension_semantics = [#tpu.dimension_semantics<parallel>], iteration_bounds = array<i64: 1>, scalar_prefetch = 0 : i64, scratch_operands = 0 : i64, tpu.core_type = #tpu.core_type<tc>, window_params = [{transform_indices = @transform_0, window_bounds = array<i64: 16, 16>}, {transform_indices = @transform_1, window_bounds = array<i64: 16, 8>}, {pipeline_mode = #tpu.pipeline_mode<synchronous>, transform_indices = @transform_2, window_bounds = array<i64: 16, 256>}, {pipeline_mode = #tpu.pipeline_mode<synchronous>, transform_indices = @transform_3, window_bounds = array<i64: 1, 256>}, {pipeline_mode = #tpu.pipeline_mode<synchronous>, transform_indices = @transform_4, window_bounds = array<i64: 256, 256>}, {pipeline_mode = #tpu.pipeline_mode<synchronous>, transform_indices = @transform_5, window_bounds = array<i64: 1, 256>}, {pipeline_mode = #tpu.pipeline_mode<synchronous>, transform_indices = @transform_6, window_bounds = array<i64: 256, 16>}, {pipeline_mode = #tpu.pipeline_mode<synchronous>, transform_indices = @transform_7, window_bounds = array<i64: 1, 16>}, {transform_indices = @transform_8, window_bounds = array<i64: 16, 8>}, {transform_indices = @transform_9, window_bounds = array<i64: 16, 8>}, {transform_indices = @transform_10, window_bounds = array<i64: 16, 1>}]} {
    %c0 = arith.constant 0 : index
    %c0_0 = arith.constant 0 : index
    %0 = vector.load %arg1[%c0, %c0_0] : memref<16x16xbf16, #tpu.memory_space<vmem>>, vector<16x16xbf16>
    %c0_1 = arith.constant 0 : index
    %c0_2 = arith.constant 0 : index
    %1 = vector.load %arg3[%c0_1, %c0_2] : memref<16x256xbf16, #tpu.memory_space<vmem>>, vector<16x256xbf16>
    %cst = arith.constant dense<0.000000e+00> : vector<16x256xf32>
    %2 = tpu.matmul %0, %1, %cst {dimension_numbers = #tpu.dot_dimension_numbers<[1], [0], [0], [1], [0, 0, 1, 1], [], []>} : vector<16x16xbf16>, vector<16x256xbf16>, vector<16x256xf32> -> vector<16x256xf32>
    %c0_3 = arith.constant 0 : index
    %c0_4 = arith.constant 0 : index
    %3 = vector.load %arg4[%c0_3, %c0_4] : memref<1x256xf32, #tpu.memory_space<vmem>>, vector<1x256xf32>
    %4 = vector.broadcast %3 : vector<1x256xf32> to vector<16x256xf32>
    %5 = arith.addf %2, %4 : vector<16x256xf32>
    %cst_5 = arith.constant 0.000000e+00 : f32
    %6 = vector.broadcast %cst_5 : f32 to vector<16x256xf32>
    %7 = arith.maximumf %5, %6 : vector<16x256xf32>
    %8 = arith.truncf %7 : vector<16x256xf32> to vector<16x256xbf16>
    %c0_6 = arith.constant 0 : index
    %c0_7 = arith.constant 0 : index
    %9 = vector.load %arg5[%c0_6, %c0_7] : memref<256x256xbf16, #tpu.memory_space<vmem>>, vector<256x256xbf16>
    %cst_8 = arith.constant dense<0.000000e+00> : vector<16x256xf32>
    %10 = tpu.matmul %8, %9, %cst_8 {dimension_numbers = #tpu.dot_dimension_numbers<[1], [0], [0], [1], [0, 0, 1, 1], [], []>} : vector<16x256xbf16>, vector<256x256xbf16>, vector<16x256xf32> -> vector<16x256xf32>
    %c0_9 = arith.constant 0 : index
    %c0_10 = arith.constant 0 : index
    %11 = vector.load %arg6[%c0_9, %c0_10] : memref<1x256xf32, #tpu.memory_space<vmem>>, vector<1x256xf32>
    %12 = vector.broadcast %11 : vector<1x256xf32> to vector<16x256xf32>
    %13 = arith.addf %10, %12 : vector<16x256xf32>
    %cst_11 = arith.constant 0.000000e+00 : f32
    %14 = vector.broadcast %cst_11 : f32 to vector<16x256xf32>
    %15 = arith.maximumf %13, %14 : vector<16x256xf32>
    %16 = arith.truncf %15 : vector<16x256xf32> to vector<16x256xbf16>
    %c0_12 = arith.constant 0 : index
    %c0_13 = arith.constant 0 : index
    %17 = vector.load %arg7[%c0_12, %c0_13] : memref<256x16xbf16, #tpu.memory_space<vmem>>, vector<256x16xbf16>
    %cst_14 = arith.constant dense<0.000000e+00> : vector<16x16xf32>
    %18 = tpu.matmul %16, %17, %cst_14 {dimension_numbers = #tpu.dot_dimension_numbers<[1], [0], [0], [1], [0, 0, 1, 1], [], []>} : vector<16x256xbf16>, vector<256x16xbf16>, vector<16x16xf32> -> vector<16x16xf32>
    %c0_15 = arith.constant 0 : index
    %c0_16 = arith.constant 0 : index
    %19 = vector.load %arg8[%c0_15, %c0_16] : memref<1x16xf32, #tpu.memory_space<vmem>>, vector<1x16xf32>
    %20 = vector.broadcast %19 : vector<1x16xf32> to vector<16x16xf32>
    %21 = arith.addf %18, %20 : vector<16x16xf32>
    %22 = vector.extract_strided_slice %21 {offsets = [0, 0], sizes = [16, 8], strides = [1, 1]} : vector<16x16xf32> to vector<16x8xf32>
    %cst_17 = arith.constant -9.000000e+00 : f32
    %cst_18 = arith.constant 9.000000e+00 : f32
    %23 = vector.broadcast %cst_17 : f32 to vector<16x8xf32>
    %24 = arith.maximumf %23, %22 : vector<16x8xf32>
    %25 = vector.broadcast %cst_18 : f32 to vector<16x8xf32>
    %26 = arith.minimumf %25, %24 : vector<16x8xf32>
    %27 = vector.extract_strided_slice %21 {offsets = [0, 8], sizes = [16, 8], strides = [1, 1]} : vector<16x16xf32> to vector<16x8xf32>
    %cst_19 = arith.constant -5.000000e+00 : f32
    %cst_20 = arith.constant 2.000000e+00 : f32
    %28 = vector.broadcast %cst_19 : f32 to vector<16x8xf32>
    %29 = arith.maximumf %28, %27 : vector<16x8xf32>
    %30 = vector.broadcast %cst_20 : f32 to vector<16x8xf32>
    %31 = arith.minimumf %30, %29 : vector<16x8xf32>
    %32 = math.exp %31 : vector<16x8xf32>
    %c0_21 = arith.constant 0 : index
    %c0_22 = arith.constant 0 : index
    %33 = vector.load %arg2[%c0_21, %c0_22] : memref<16x8xf32, #tpu.memory_space<vmem>>, vector<16x8xf32>
    %34 = arith.mulf %32, %33 : vector<16x8xf32>
    %35 = arith.addf %26, %34 : vector<16x8xf32>
    %36 = math.tanh %35 : vector<16x8xf32>
    %37 = arith.mulf %33, %33 : vector<16x8xf32>
    %cst_23 = arith.constant -5.000000e-01 : f32
    %38 = vector.broadcast %cst_23 : f32 to vector<16x8xf32>
    %39 = arith.mulf %38, %37 : vector<16x8xf32>
    %40 = arith.subf %39, %31 : vector<16x8xf32>
    %cst_24 = arith.constant 0.918938517 : f32
    %41 = vector.broadcast %cst_24 : f32 to vector<16x8xf32>
    %42 = arith.subf %40, %41 : vector<16x8xf32>
    %cst_25 = arith.constant -2.000000e+00 : f32
    %43 = vector.broadcast %cst_25 : f32 to vector<16x8xf32>
    %44 = arith.mulf %43, %35 : vector<16x8xf32>
    %cst_26 = arith.constant 0.000000e+00 : f32
    %45 = vector.broadcast %cst_26 : f32 to vector<16x8xf32>
    %46 = arith.maximumf %44, %45 : vector<16x8xf32>
    %47 = math.absf %44 : vector<16x8xf32>
    %cst_27 = arith.constant 0.000000e+00 : f32
    %48 = vector.broadcast %cst_27 : f32 to vector<16x8xf32>
    %49 = arith.subf %48, %47 : vector<16x8xf32>
    %50 = math.exp %49 : vector<16x8xf32>
    %51 = math.log1p %50 : vector<16x8xf32>
    %52 = arith.addf %46, %51 : vector<16x8xf32>
    %cst_28 = arith.constant 0.693147182 : f32
    %53 = vector.broadcast %cst_28 : f32 to vector<16x8xf32>
    %54 = arith.subf %53, %35 : vector<16x8xf32>
    %55 = arith.subf %54, %52 : vector<16x8xf32>
    %cst_29 = arith.constant 2.000000e+00 : f32
    %56 = vector.broadcast %cst_29 : f32 to vector<16x8xf32>
    %57 = arith.mulf %56, %55 : vector<16x8xf32>
    %58 = arith.subf %42, %57 : vector<16x8xf32>
    %c0_30 = arith.constant 0 : index
    %c0_31 = arith.constant 0 : index
    %59 = vector.load %arg9[%c0_30, %c0_31] : memref<16x8xf32, #tpu.memory_space<vmem>>, vector<16x8xf32>
    tpu.vector_store %arg9[%c0_30, %c0_31], %36 {strides = array<i32>} : memref<16x8xf32, #tpu.memory_space<vmem>>, vector<16x8xf32>,
    %60 = math.tanh %26 : vector<16x8xf32>
    %c0_32 = arith.constant 0 : index
    %c0_33 = arith.constant 0 : index
    %61 = vector.load %arg10[%c0_32, %c0_33] : memref<16x8xf32, #tpu.memory_space<vmem>>, vector<16x8xf32>
    tpu.vector_store %arg10[%c0_32, %c0_33], %60 {strides = array<i32>} : memref<16x8xf32, #tpu.memory_space<vmem>>, vector<16x8xf32>,
    %cst_34 = arith.constant dense<0.000000e+00> : vector<16xf32>
    %62 = vector.multi_reduction <add>, %58, %cst_34 [1] : vector<16x8xf32> to vector<16xf32>
    %63 = vector.shape_cast %62 : vector<16xf32> to vector<16x1xf32>
    %c0_35 = arith.constant 0 : index
    %c0_36 = arith.constant 0 : index
    %64 = vector.load %arg11[%c0_35, %c0_36] : memref<16x1xf32, #tpu.memory_space<vmem>>, vector<16x1xf32>
    tpu.vector_store %arg11[%c0_35, %c0_36], %63 {strides = array<i32>} : memref<16x1xf32, #tpu.memory_space<vmem>>, vector<16x1xf32>,
    return
  }
  func.func @transform_0(%arg0: i32) -> (i32, i32) {
    %c0_i32 = arith.constant 0 : i32
    %c0_i32_0 = arith.constant 0 : i32
    return %arg0, %c0_i32 : i32, i32
  }
  func.func @transform_1(%arg0: i32) -> (i32, i32) {
    %c0_i32 = arith.constant 0 : i32
    %c0_i32_0 = arith.constant 0 : i32
    return %arg0, %c0_i32 : i32, i32
  }
  func.func @transform_2(%arg0: i32) -> (i32, i32) {
    %c0_i32 = arith.constant 0 : i32
    %c0_i32_0 = arith.constant 0 : i32
    %c0_i32_1 = arith.constant 0 : i32
    return %c0_i32, %c0_i32_0 : i32, i32
  }
  func.func @transform_3(%arg0: i32) -> (i32, i32) {
    %c0_i32 = arith.constant 0 : i32
    %c0_i32_0 = arith.constant 0 : i32
    %c0_i32_1 = arith.constant 0 : i32
    return %c0_i32, %c0_i32_0 : i32, i32
  }
  func.func @transform_4(%arg0: i32) -> (i32, i32) {
    %c0_i32 = arith.constant 0 : i32
    %c0_i32_0 = arith.constant 0 : i32
    %c0_i32_1 = arith.constant 0 : i32
    return %c0_i32, %c0_i32_0 : i32, i32
  }
  func.func @transform_5(%arg0: i32) -> (i32, i32) {
    %c0_i32 = arith.constant 0 : i32
    %c0_i32_0 = arith.constant 0 : i32
    %c0_i32_1 = arith.constant 0 : i32
    return %c0_i32, %c0_i32_0 : i32, i32
  }
  func.func @transform_6(%arg0: i32) -> (i32, i32) {
    %c0_i32 = arith.constant 0 : i32
    %c0_i32_0 = arith.constant 0 : i32
    %c0_i32_1 = arith.constant 0 : i32
    return %c0_i32, %c0_i32_0 : i32, i32
  }
  func.func @transform_7(%arg0: i32) -> (i32, i32) {
    %c0_i32 = arith.constant 0 : i32
    %c0_i32_0 = arith.constant 0 : i32
    %c0_i32_1 = arith.constant 0 : i32
    return %c0_i32, %c0_i32_0 : i32, i32
  }
  func.func @transform_8(%arg0: i32) -> (i32, i32) {
    %c0_i32 = arith.constant 0 : i32
    %c0_i32_0 = arith.constant 0 : i32
    return %arg0, %c0_i32 : i32, i32
  }
  func.func @transform_9(%arg0: i32) -> (i32, i32) {
    %c0_i32 = arith.constant 0 : i32
    %c0_i32_0 = arith.constant 0 : i32
    return %arg0, %c0_i32 : i32, i32
  }
  func.func @transform_10(%arg0: i32) -> (i32, i32) {
    %c0_i32 = arith.constant 0 : i32
    %c0_i32_0 = arith.constant 0 : i32
    return %arg0, %c0_i32 : i32, i32
  }
}

</mosaic_0001>

<llo_original>
// kernel: tpu_custom_call.1
$region0: #{tpu_custom_call.1}
  #allocation0 [shape = 'u32[]', space=smem, size = 0x4, offset = 0x4, fixed_abs, tag = 'smem constant byte address 0x4 - core index']
  #allocation1 [shape = 'u32[144,128]{1,0:T(1,128)}', space=vmem, size = 0x12000, scoped, tag = 'internal scratch']
  %s0 = inlined_call_operand.vmem [shape: bf16[16,16], index: 0, kind: input, shape index: {}]
  %s1 = inlined_call_operand.vmem [shape: f32[16,8], index: 1, kind: input, shape index: {}]
  %s2 = inlined_call_operand.vmem [shape: bf16[16,256], index: 2, kind: input, shape index: {}]
  %s3 = inlined_call_operand.vmem [shape: f32[1,256], index: 3, kind: input, shape index: {}]
  %s4 = inlined_call_operand.hbm [shape: bf16[256,256], index: 4, kind: input, shape index: {}]
  %s5 = inlined_call_operand.vmem [shape: f32[1,256], index: 5, kind: input, shape index: {}]
  %s6 = inlined_call_operand.vmem [shape: bf16[256,16], index: 6, kind: input, shape index: {}]
  %s7 = inlined_call_operand.vmem [shape: f32[1,16], index: 7, kind: input, shape index: {}]
  %s8 = inlined_call_operand.vmem [shape: f32[16,8], index: 8, kind: output, shape index: {0}]
  %s9 = inlined_call_operand.vmem [shape: f32[16,8], index: 9, kind: output, shape index: {1}]
  %s10 = inlined_call_operand.vmem [shape: f32[16,1], index: 10, kind: output, shape index: {2}]
  %11 = xla_tuple %s8, %s9, %s10
  %s12 = sld [smem:[#allocation0]]
  $region62: #{tpu_custom_call.1} parent=0
    _
  %s14 = ssub.s32 1, %s12
  %s15 = scalar_select 0, %s14, %s12
  $region1: #{tpu_custom_call.1} parent=0
    #allocation2 [shape = 'u8[131072]{0}', space=vmem, size = 0x20000, scoped, tag = 'input window, operand 4, single buffered']
    #allocation3 [shape = 's32[1]{0}', space=sflag, size = 0x4, scoped, tag = 'scoped memory for tpu_custom_call.1']
    %16 = vsyncpa [#allocation3], 0
    // Predicated region
    $region2: #{tpu_custom_call.1} parent=1 // pred_check
      _
    $region3: #{tpu_custom_call.1} parent=1 // pred_check_branch
      %18 = sbr.rel (0) target = $region5
    $region4: #{tpu_custom_call.1} parent=1 // pred_region
      _
    $region5: #{tpu_custom_call.1} parent=1 // pred_fallthru
      _
    // Predicated region
    $region6: #{tpu_custom_call.1} parent=1 // pred_check
      _
    $region7: #{tpu_custom_call.1} parent=1 // pred_check_branch
      %20 = sbr.rel (0) target = $region9
    $region8: #{tpu_custom_call.1} parent=1 // pred_region
      _
    $region9: #{tpu_custom_call.1} parent=1 // pred_fallthru
      _
    // Predicated region
    $region10: #{tpu_custom_call.1} parent=1 // pred_check
      _
    $region11: #{tpu_custom_call.1} parent=1 // pred_check_branch
      %22 = sbr.rel (0) target = $region13
    $region12: #{tpu_custom_call.1} parent=1 // pred_region
      _
    $region13: #{tpu_custom_call.1} parent=1 // pred_fallthru
      _
    // Predicated region
    $region14: #{tpu_custom_call.1} parent=1 // pred_check
      _
    $region15: #{tpu_custom_call.1} parent=1 // pred_check_branch
      %24 = sbr.rel (0) target = $region17
    $region16: #{tpu_custom_call.1} parent=1 // pred_region
      _
    $region17: #{tpu_custom_call.1} parent=1 // pred_fallthru
      _
    // Predicated region
    $region18: #{tpu_custom_call.1} parent=1 // pred_check
      _
    $region19: #{tpu_custom_call.1} parent=1 // pred_check_branch
      %26 = sbr.rel (0) target = $region21
    $region20: #{tpu_custom_call.1} parent=1 // pred_region
      %s28 = ssub.s32 4096, 4096
      %29 = vsyncadd [#allocation3], %s28
      %s30 = sshll.u32 [#allocation2], 4
      %s31 = int_to_ptr.vmem [resolvable:$true] %s30
      %36 = dma.hbm_to_vmem [thread:$0]  %s4, 4096, %s31, [#allocation3], 128, 128, 8
    $region21: #{tpu_custom_call.1} parent=1 // pred_fallthru
      _
    // Predicated region
    $region22: #{tpu_custom_call.1} parent=1 // pred_check
      _
    $region23: #{tpu_custom_call.1} parent=1 // pred_check_branch
      %38 = sbr.rel (0) target = $region25
    $region24: #{tpu_custom_call.1} parent=1 // pred_region
      _
    $region25: #{tpu_custom_call.1} parent=1 // pred_fallthru
      _
    // Predicated region
    $region26: #{tpu_custom_call.1} parent=1 // pred_check
      _
    $region27: #{tpu_custom_call.1} parent=1 // pred_check_branch
      %40 = sbr.rel (0) target = $region29
    $region28: #{tpu_custom_call.1} parent=1 // pred_region
      _
    $region29: #{tpu_custom_call.1} parent=1 // pred_fallthru
      _
    // Predicated region
    $region30: #{tpu_custom_call.1} parent=1 // pred_check
      _
    $region31: #{tpu_custom_call.1} parent=1 // pred_check_branch
      %42 = sbr.rel (0) target = $region33
    $region32: #{tpu_custom_call.1} parent=1 // pred_region
      _
    $region33: #{tpu_custom_call.1} parent=1 // pred_fallthru
      _
    // Predicated region
    $region34: #{tpu_custom_call.1} parent=1 // pred_check
      _
    $region35: #{tpu_custom_call.1} parent=1 // pred_check_branch
      %44 = sbr.rel (0) target = $region37
    $region36: #{tpu_custom_call.1} parent=1 // pred_region
      %45 = dma.done [#allocation3], 4096
    $region37: #{tpu_custom_call.1} parent=1 // pred_fallthru
      _
    %v47 = vld [vmem:[%s0] sm:$0xf]
    %v48 = vld [vmem:[%s0 + $0x4] sm:$0xf]
    %v49 = vld [vmem:[%s2] sm:$0xff]
    %v50 = vld [vmem:[%s2 + $0x8] sm:$0xff]
    %v51 = vld [vmem:[%s3] sm:$0x3]
    %v53 = vlaneseq
    %v54 = vshrl.u32 %v53, 7
    %v55 = vsub.s32 0, %v54
    %v56 = vrot.slane %v51, %v55
    %v57 = vlaneseq
    %v58 = vshrl.u32 %v57, 7
    %v59 = vsub.s32 1, %v58
    %v60 = vrot.slane %v51, %v59
    %v65 = vunpack.c.l.b16 %v47
    %v66 = vunpack.c.l.b16 %v48
    %v67 = vpack.c.b16 %v66, %v65
    %v70 = vunpack.c.l.b16 %v49
    %v71 = vunpack.c.h.b16 %v49
    %v72 = vunpack.c.l.b16 %v50
    %v73 = vunpack.c.h.b16 %v50
    %v74 = vpack.c.b16 %v72, %v70
    %v75 = vpack.c.b16 %v73, %v71
    %vm78 = vcmask 130048
    %v80 = vsel %vm78, %v67, 0
    %82 = vmatprep.subr.bf16.mxu0 %v75
    %83 = vmatpush1.bf16.msra.mxu0 %v74
    %84 = vmatprep.subr.bf16.mxu0 0
    %85 = vmatpush1.bf16.msra.mxu0 0
    %86 = vmatprep.subr.bf16.mxu0 0
    %87 = vmatpush1.bf16.msra.mxu0 0
    %88 = vmatprep.subr.bf16.mxu0 0
    %89 = vmatpush1.bf16.msra.mxu0 0
    %90 = vmatprep.subr.bf16.mxu0 0
    %91 = vmatpush1.bf16.msra.mxu0 0
    %92 = vmatprep.subr.bf16.mxu0 0
    %93 = vmatpush1.bf16.msra.mxu0 0
    %94 = vmatprep.subr.bf16.mxu0 0
    %95 = vmatpush1.bf16.msra.mxu0 0
    %96 = vmatprep.subr.bf16.mxu0 0
    %97 = vmatpush1.bf16.msra.mxu0 0
    %98 = vmatprep.subr.bf16.mxu0 0
    %99 = vmatpush1.bf16.msra.mxu0 0
    %100 = vmatprep.subr.bf16.mxu0 0
    %101 = vmatpush1.bf16.msra.mxu0 0
    %102 = vmatprep.subr.bf16.mxu0 0
    %103 = vmatpush1.bf16.msra.mxu0 0
    %104 = vmatprep.subr.bf16.mxu0 0
    %105 = vmatpush1.bf16.msra.mxu0 0
    %106 = vmatprep.subr.bf16.mxu0 0
    %107 = vmatpush1.bf16.msra.mxu0 0
    %108 = vmatprep.subr.bf16.mxu0 0
    %109 = vmatpush1.bf16.msra.mxu0 0
    %110 = vmatprep.subr.bf16.mxu0 0
    %111 = vmatpush1.bf16.msra.mxu0 0
    %112 = vmatprep.subr.bf16.mxu0 0
    %113 = vmatpush1.bf16.msra.mxu0 0
    %114 = vmatprep.mubr.bf16.mxu0 0
    %115 = vmatmul.mubr.bf16.gmra.mrb[0].mxu0 %v80
    %v116 = vpop.f32.mrb[0].mxu0
    %v117 = vadd.f32 %v56, %v116
    %v118 = vpop.f32.mrb[0].mxu0
    %v119 = vadd.f32 %v60, %v118
    %v120 = vpop.f32.mrb[0].mxu0
    %v121 = vadd.f32 %v56, %v120
    %v122 = vpop.f32.mrb[0].mxu0
    %v123 = vadd.f32 %v60, %v122
    %124 = vdwg.mxu0
    %v125 = vmax.f32 %v117, 0.0
    %v126 = vmax.f32 %v119, 0.0
    %v127 = vmax.f32 %v121, 0.0
    %v128 = vmax.f32 %v123, 0.0
    %v129 = vpack.c.bf16 %v127, %v125
    %v130 = vpack.c.bf16 %v128, %v126
    %v131 = vld [vmem:[#allocation2] sm:$0xff]
    %v132 = vld [vmem:[#allocation2 + $0x8] sm:$0xff]
    %v133 = vld [vmem:[#allocation2 + $0x10] sm:$0xff]
    %v134 = vld [vmem:[#allocation2 + $0x18] sm:$0xff]
    %v135 = vld [vmem:[#allocation2 + $0x20] sm:$0xff]
    %v136 = vld [vmem:[#allocation2 + $0x28] sm:$0xff]
    %v137 = vld [vmem:[#allocation2 + $0x30] sm:$0xff]
    %v138 = vld [vmem:[#allocation2 + $0x38] sm:$0xff]
    %v139 = vld [vmem:[#allocation2 + $0x40] sm:$0xff]
    %v140 = vld [vmem:[#allocation2 + $0x48] sm:$0xff]
    %v141 = vld [vmem:[#allocation2 + $0x50] sm:$0xff]
    %v142 = vld [vmem:[#allocation2 + $0x58] sm:$0xff]
    %v143 = vld [vmem:[#allocation2 + $0x60] sm:$0xff]
    %v144 = vld [vmem:[#allocation2 + $0x68] sm:$0xff]
    %v145 = vld [vmem:[#allocation2 + $0x70] sm:$0xff]
    %v146 = vld [vmem:[#allocation2 + $0x78] sm:$0xff]
    %v147 = vld [vmem:[#allocation2 + $0x80] sm:$0xff]
    %v148 = vld [vmem:[#allocation2 + $0x88] sm:$0xff]
    %v149 = vld [vmem:[#allocation2 + $0x90] sm:$0xff]
    %v150 = vld [vmem:[#allocation2 + $0x98] sm:$0xff]
    %v151 = vld [vmem:[#allocation2 + $0xa0] sm:$0xff]
    %v152 = vld [vmem:[#allocation2 + $0xa8] sm:$0xff]
    %v153 = vld [vmem:[#allocation2 + $0xb0] sm:$0xff]
    %v154 = vld [vmem:[#allocation2 + $0xb8] sm:$0xff]
    %v155 = vld [vmem:[#allocation2 + $0xc0] sm:$0xff]
    %v156 = vld [vmem:[#allocation2 + $0xc8] sm:$0xff]
    %v157 = vld [vmem:[#allocation2 + $0xd0] sm:$0xff]
    %v158 = vld [vmem:[#allocation2 + $0xd8] sm:$0xff]
    %v159 = vld [vmem:[#allocation2 + $0xe0] sm:$0xff]
    %v160 = vld [vmem:[#allocation2 + $0xe8] sm:$0xff]
    %v161 = vld [vmem:[#allocation2 + $0xf0] sm:$0xff]
    %v162 = vld [vmem:[#allocation2 + $0xf8] sm:$0xff]
    %v163 = vld [vmem:[%s5] sm:$0x3]
    %v165 = vlaneseq
    %v166 = vshrl.u32 %v165, 7
    %v167 = vsub.s32 0, %v166
    %v168 = vrot.slane %v163, %v167
    %v169 = vlaneseq
    %v170 = vshrl.u32 %v169, 7
    %v171 = vsub.s32 1, %v170
    %v172 = vrot.slane %v163, %v171
    %v207 = vunpack.c.l.b16 %v131
    %v208 = vunpack.c.h.b16 %v131
    %v209 = vunpack.c.l.b16 %v132
    %v210 = vunpack.c.h.b16 %v132
    %v211 = vunpack.c.l.b16 %v133
    %v212 = vunpack.c.h.b16 %v133
    %v213 = vunpack.c.l.b16 %v134
    %v214 = vunpack.c.h.b16 %v134
    %v215 = vunpack.c.l.b16 %v135
    %v216 = vunpack.c.h.b16 %v135
    %v217 = vunpack.c.l.b16 %v136
    %v218 = vunpack.c.h.b16 %v136
    %v219 = vunpack.c.l.b16 %v137
    %v220 = vunpack.c.h.b16 %v137
    %v221 = vunpack.c.l.b16 %v138
    %v222 = vunpack.c.h.b16 %v138
    %v223 = vunpack.c.l.b16 %v139
    %v224 = vunpack.c.h.b16 %v139
    %v225 = vunpack.c.l.b16 %v140
    %v226 = vunpack.c.h.b16 %v140
    %v227 = vunpack.c.l.b16 %v141
    %v228 = vunpack.c.h.b16 %v141
    %v229 = vunpack.c.l.b16 %v142
    %v230 = vunpack.c.h.b16 %v142
    %v231 = vunpack.c.l.b16 %v143
    %v232 = vunpack.c.h.b16 %v143
    %v233 = vunpack.c.l.b16 %v144
    %v234 = vunpack.c.h.b16 %v144
    %v235 = vunpack.c.l.b16 %v145
    %v236 = vunpack.c.h.b16 %v145
    %v237 = vunpack.c.l.b16 %v146
    %v238 = vunpack.c.h.b16 %v146
    %v239 = vunpack.c.l.b16 %v147
    %v240 = vunpack.c.h.b16 %v147
    %v241 = vunpack.c.l.b16 %v148
    %v242 = vunpack.c.h.b16 %v148
    %v243 = vunpack.c.l.b16 %v149
    %v244 = vunpack.c.h.b16 %v149
    %v245 = vunpack.c.l.b16 %v150
    %v246 = vunpack.c.h.b16 %v150
    %v247 = vunpack.c.l.b16 %v151
    %v248 = vunpack.c.h.b16 %v151
    %v249 = vunpack.c.l.b16 %v152
    %v250 = vunpack.c.h.b16 %v152
    %v251 = vunpack.c.l.b16 %v153
    %v252 = vunpack.c.h.b16 %v153
    %v253 = vunpack.c.l.b16 %v154
    %v254 = vunpack.c.h.b16 %v154
    %v255 = vunpack.c.l.b16 %v155
    %v256 = vunpack.c.h.b16 %v155
    %v257 = vunpack.c.l.b16 %v156
    %v258 = vunpack.c.h.b16 %v156
    %v259 = vunpack.c.l.b16 %v157
    %v260 = vunpack.c.h.b16 %v157
    %v261 = vunpack.c.l.b16 %v158
    %v262 = vunpack.c.h.b16 %v158
    %v263 = vunpack.c.l.b16 %v159
    %v264 = vunpack.c.h.b16 %v159
    %v265 = vunpack.c.l.b16 %v160
    %v266 = vunpack.c.h.b16 %v160
    %v267 = vunpack.c.l.b16 %v161
    %v268 = vunpack.c.h.b16 %v161
    %v269 = vunpack.c.l.b16 %v162
    %v270 = vunpack.c.h.b16 %v162
    %v271 = vpack.c.b16 %v209, %v207
    %v272 = vpack.c.b16 %v210, %v208
    %v273 = vpack.c.b16 %v213, %v211
    %v274 = vpack.c.b16 %v214, %v212
    %v275 = vpack.c.b16 %v217, %v215
    %v276 = vpack.c.b16 %v218, %v216
    %v277 = vpack.c.b16 %v221, %v219
    %v278 = vpack.c.b16 %v222, %v220
    %v279 = vpack.c.b16 %v225, %v223
    %v280 = vpack.c.b16 %v226, %v224
    %v281 = vpack.c.b16 %v229, %v227
    %v282 = vpack.c.b16 %v230, %v228
    %v283 = vpack.c.b16 %v233, %v231
    %v284 = vpack.c.b16 %v234, %v232
    %v285 = vpack.c.b16 %v237, %v235
    %v286 = vpack.c.b16 %v238, %v236
    %v287 = vpack.c.b16 %v241, %v239
    %v288 = vpack.c.b16 %v242, %v240
    %v289 = vpack.c.b16 %v245, %v243
    %v290 = vpack.c.b16 %v246, %v244
    %v291 = vpack.c.b16 %v249, %v247
    %v292 = vpack.c.b16 %v250, %v248
    %v293 = vpack.c.b16 %v253, %v251
    %v294 = vpack.c.b16 %v254, %v252
    %v295 = vpack.c.b16 %v257, %v255
    %v296 = vpack.c.b16 %v258, %v256
    %v297 = vpack.c.b16 %v261, %v259
    %v298 = vpack.c.b16 %v262, %v260
    %v299 = vpack.c.b16 %v265, %v263
    %v300 = vpack.c.b16 %v266, %v264
    %v301 = vpack.c.b16 %v269, %v267
    %v302 = vpack.c.b16 %v270, %v268
    %335 = vmatprep.subr.bf16.mxu0 %v272
    %336 = vmatpush1.bf16.msra.mxu0 %v271
    %337 = vmatprep.subr.bf16.mxu0 %v274
    %338 = vmatpush1.bf16.msra.mxu0 %v273
    %339 = vmatprep.subr.bf16.mxu0 %v276
    %340 = vmatpush1.bf16.msra.mxu0 %v275
    %341 = vmatprep.subr.bf16.mxu0 %v278
    %342 = vmatpush1.bf16.msra.mxu0 %v277
    %343 = vmatprep.subr.bf16.mxu0 %v280
    %344 = vmatpush1.bf16.msra.mxu0 %v279
    %345 = vmatprep.subr.bf16.mxu0 %v282
    %346 = vmatpush1.bf16.msra.mxu0 %v281
    %347 = vmatprep.subr.bf16.mxu0 %v284
    %348 = vmatpush1.bf16.msra.mxu0 %v283
    %349 = vmatprep.subr.bf16.mxu0 %v286
    %350 = vmatpush1.bf16.msra.mxu0 %v285
    %351 = vmatprep.subr.bf16.mxu0 %v288
    %352 = vmatpush1.bf16.msra.mxu0 %v287
    %353 = vmatprep.subr.bf16.mxu0 %v290
    %354 = vmatpush1.bf16.msra.mxu0 %v289
    %355 = vmatprep.subr.bf16.mxu0 %v292
    %356 = vmatpush1.bf16.msra.mxu0 %v291
    %357 = vmatprep.subr.bf16.mxu0 %v294
    %358 = vmatpush1.bf16.msra.mxu0 %v293
    %359 = vmatprep.subr.bf16.mxu0 %v296
    %360 = vmatpush1.bf16.msra.mxu0 %v295
    %361 = vmatprep.subr.bf16.mxu0 %v298
    %362 = vmatpush1.bf16.msra.mxu0 %v297
    %363 = vmatprep.subr.bf16.mxu0 %v300
    %364 = vmatpush1.bf16.msra.mxu0 %v299
    %365 = vmatprep.subr.bf16.mxu0 %v302
    %366 = vmatpush1.bf16.msra.mxu0 %v301
    %367 = vmatprep.mubr.bf16.mxu0 %v130
    %368 = vmatmul.mubr.bf16.gmra.mrb[0].mxu0 %v129
    %v369 = vpop.f32.mrb[0].mxu0
    %v370 = vadd.f32 %v168, %v369
    %v371 = vpop.f32.mrb[0].mxu0
    %v372 = vadd.f32 %v172, %v371
    %v373 = vpop.f32.mrb[0].mxu0
    %v374 = vadd.f32 %v168, %v373
    %v375 = vpop.f32.mrb[0].mxu0
    %v376 = vadd.f32 %v172, %v375
    %377 = vdwg.mxu0
    %v378 = vmax.f32 %v370, 0.0
    %v379 = vmax.f32 %v372, 0.0
    %v380 = vmax.f32 %v374, 0.0
    %v381 = vmax.f32 %v376, 0.0
    %v382 = vpack.c.bf16 %v380, %v378
    %v383 = vpack.c.bf16 %v381, %v379
    %v384 = vld [vmem:[%s6] sm:$0xf]
    %v385 = vld [vmem:[%s6 + $0x4] sm:$0xf]
    %v386 = vld [vmem:[%s6 + $0x8] sm:$0xf]
    %v387 = vld [vmem:[%s6 + $0xc] sm:$0xf]
    %v388 = vld [vmem:[%s6 + $0x10] sm:$0xf]
    %v389 = vld [vmem:[%s6 + $0x14] sm:$0xf]
    %v390 = vld [vmem:[%s6 + $0x18] sm:$0xf]
    %v391 = vld [vmem:[%s6 + $0x1c] sm:$0xf]
    %v392 = vld [vmem:[%s6 + $0x20] sm:$0xf]
    %v393 = vld [vmem:[%s6 + $0x24] sm:$0xf]
    %v394 = vld [vmem:[%s6 + $0x28] sm:$0xf]
    %v395 = vld [vmem:[%s6 + $0x2c] sm:$0xf]
    %v396 = vld [vmem:[%s6 + $0x30] sm:$0xf]
    %v397 = vld [vmem:[%s6 + $0x34] sm:$0xf]
    %v398 = vld [vmem:[%s6 + $0x38] sm:$0xf]
    %v399 = vld [vmem:[%s6 + $0x3c] sm:$0xf]
    %v400 = vld [vmem:[%s6 + $0x40] sm:$0xf]
    %v401 = vld [vmem:[%s6 + $0x44] sm:$0xf]
    %v402 = vld [vmem:[%s6 + $0x48] sm:$0xf]
    %v403 = vld [vmem:[%s6 + $0x4c] sm:$0xf]
    %v404 = vld [vmem:[%s6 + $0x50] sm:$0xf]
    %v405 = vld [vmem:[%s6 + $0x54] sm:$0xf]
    %v406 = vld [vmem:[%s6 + $0x58] sm:$0xf]
    %v407 = vld [vmem:[%s6 + $0x5c] sm:$0xf]
    %v408 = vld [vmem:[%s6 + $0x60] sm:$0xf]
    %v409 = vld [vmem:[%s6 + $0x64] sm:$0xf]
    %v410 = vld [vmem:[%s6 + $0x68] sm:$0xf]
    %v411 = vld [vmem:[%s6 + $0x6c] sm:$0xf]
    %v412 = vld [vmem:[%s6 + $0x70] sm:$0xf]
    %v413 = vld [vmem:[%s6 + $0x74] sm:$0xf]
    %v414 = vld [vmem:[%s6 + $0x78] sm:$0xf]
    %v415 = vld [vmem:[%s6 + $0x7c] sm:$0xf]
    %v416 = vld [vmem:[%s7] sm:$0x1]
    %v418 = vlaneseq
    %v419 = vshrl.u32 %v418, 7
    %v420 = vsub.s32 0, %v419
    %v421 = vrot.slane %v416, %v420
    %v455 = vunpack.c.l.b16 %v384
    %v456 = vunpack.c.l.b16 %v385
    %v457 = vunpack.c.l.b16 %v386
    %v458 = vunpack.c.l.b16 %v387
    %v459 = vunpack.c.l.b16 %v388
    %v460 = vunpack.c.l.b16 %v389
    %v461 = vunpack.c.l.b16 %v390
    %v462 = vunpack.c.l.b16 %v391
    %v463 = vunpack.c.l.b16 %v392
    %v464 = vunpack.c.l.b16 %v393
    %v465 = vunpack.c.l.b16 %v394
    %v466 = vunpack.c.l.b16 %v395
    %v467 = vunpack.c.l.b16 %v396
    %v468 = vunpack.c.l.b16 %v397
    %v469 = vunpack.c.l.b16 %v398
    %v470 = vunpack.c.l.b16 %v399
    %v471 = vunpack.c.l.b16 %v400
    %v472 = vunpack.c.l.b16 %v401
    %v473 = vunpack.c.l.b16 %v402
    %v474 = vunpack.c.l.b16 %v403
    %v475 = vunpack.c.l.b16 %v404
    %v476 = vunpack.c.l.b16 %v405
    %v477 = vunpack.c.l.b16 %v406
    %v478 = vunpack.c.l.b16 %v407
    %v479 = vunpack.c.l.b16 %v408
    %v480 = vunpack.c.l.b16 %v409
    %v481 = vunpack.c.l.b16 %v410
    %v482 = vunpack.c.l.b16 %v411
    %v483 = vunpack.c.l.b16 %v412
    %v484 = vunpack.c.l.b16 %v413
    %v485 = vunpack.c.l.b16 %v414
    %v486 = vunpack.c.l.b16 %v415
    %v487 = vpack.c.b16 %v456, %v455
    %v488 = vpack.c.b16 %v458, %v457
    %v489 = vpack.c.b16 %v460, %v459
    %v490 = vpack.c.b16 %v462, %v461
    %v491 = vpack.c.b16 %v464, %v463
    %v492 = vpack.c.b16 %v466, %v465
    %v493 = vpack.c.b16 %v468, %v467
    %v494 = vpack.c.b16 %v470, %v469
    %v495 = vpack.c.b16 %v472, %v471
    %v496 = vpack.c.b16 %v474, %v473
    %v497 = vpack.c.b16 %v476, %v475
    %v498 = vpack.c.b16 %v478, %v477
    %v499 = vpack.c.b16 %v480, %v479
    %v500 = vpack.c.b16 %v482, %v481
    %v501 = vpack.c.b16 %v484, %v483
    %v502 = vpack.c.b16 %v486, %v485
    %519 = vmatprep.subr.bf16.mxu0 0
    %520 = vmatpush1.bf16.msra.mxu0 %v487
    %521 = vmatprep.subr.bf16.mxu0 0
    %522 = vmatpush1.bf16.msra.mxu0 %v488
    %523 = vmatprep.subr.bf16.mxu0 0
    %524 = vmatpush1.bf16.msra.mxu0 %v489
    %525 = vmatprep.subr.bf16.mxu0 0
    %526 = vmatpush1.bf16.msra.mxu0 %v490
    %527 = vmatprep.subr.bf16.mxu0 0
    %528 = vmatpush1.bf16.msra.mxu0 %v491
    %529 = vmatprep.subr.bf16.mxu0 0
    %530 = vmatpush1.bf16.msra.mxu0 %v492
    %531 = vmatprep.subr.bf16.mxu0 0
    %532 = vmatpush1.bf16.msra.mxu0 %v493
    %533 = vmatprep.subr.bf16.mxu0 0
    %534 = vmatpush1.bf16.msra.mxu0 %v494
    %535 = vmatprep.subr.bf16.mxu0 0
    %536 = vmatpush1.bf16.msra.mxu0 %v495
    %537 = vmatprep.subr.bf16.mxu0 0
    %538 = vmatpush1.bf16.msra.mxu0 %v496
    %539 = vmatprep.subr.bf16.mxu0 0
    %540 = vmatpush1.bf16.msra.mxu0 %v497
    %541 = vmatprep.subr.bf16.mxu0 0
    %542 = vmatpush1.bf16.msra.mxu0 %v498
    %543 = vmatprep.subr.bf16.mxu0 0
    %544 = vmatpush1.bf16.msra.mxu0 %v499
    %545 = vmatprep.subr.bf16.mxu0 0
    %546 = vmatpush1.bf16.msra.mxu0 %v500
    %547 = vmatprep.subr.bf16.mxu0 0
    %548 = vmatpush1.bf16.msra.mxu0 %v501
    %549 = vmatprep.subr.bf16.mxu0 0
    %550 = vmatpush1.bf16.msra.mxu0 %v502
    %551 = vmatprep.mubr.bf16.mxu0 %v383
    %552 = vmatmul.mubr.bf16.gmra.mrb[0].mxu0 %v382
    %v553 = vpop.f32.mrb[0].mxu0
    %v554 = vadd.f32 %v421, %v553
    %v555 = vpop.f32.mrb[0].mxu0
    %v556 = vpop.f32.mrb[0].mxu0
    %v557 = vadd.f32 %v421, %v556
    %v558 = vpop.f32.mrb[0].mxu0
    %559 = vdwg.mxu0
    %v560 = vmax.f32 %v554, -9.0
    %v561 = vmax.f32 %v557, -9.0
    %v562 = vmin.f32 %v560, 9.0
    %v563 = vmin.f32 %v561, 9.0
    %v564 = vmax.f32 %v554, -5.0
    %v565 = vmax.f32 %v557, -5.0
    %v566 = vmin.f32 %v564, 2.0
    %v567 = vmin.f32 %v565, 2.0
    %v568 = vmul.f32 %v566, 1.442695
    %v569 = vpow.pop %v568
    %v570 = vmul.f32 %v567, 1.442695
    %v571 = vpow.pop %v570
    %v572 = vld [vmem:[%s1] sm:$0xff]
    %v573 = vld [vmem:[%s1 + $0x8] sm:$0xff]
    %576 = vrot.lane.b32.xlu0 %v572, 8
    %v577 = vpop.permute.xlu0 %576
    %578 = vrot.lane.b32.xlu0 %v573, 8
    %v579 = vpop.permute.xlu0 %578
    %v582 = vmul.f32 %v569, %v577
    %v583 = vmul.f32 %v571, %v579
    %586 = vrot.lane.b32.xlu0 %v582, 120
    %v587 = vpop.permute.xlu0 %586
    %588 = vrot.lane.b32.xlu0 %v583, 120
    %v589 = vpop.permute.xlu0 %588
    %v592 = vadd.f32 %v562, %v587
    %v593 = vadd.f32 %v563, %v589
    %v594 = vtanh.pop %v592
    %v595 = vtanh.pop %v593
    %v596 = vmul.f32 %v572, %v572
    %v597 = vmul.f32 %v573, %v573
    %v598 = vmul.f32 %v596, -0.5
    %v599 = vmul.f32 %v597, -0.5
    %602 = vrot.lane.b32.xlu0 %v566, 120
    %v603 = vpop.permute.xlu0 %602
    %604 = vrot.lane.b32.xlu0 %v567, 120
    %v605 = vpop.permute.xlu0 %604
    %v608 = vsub.f32 %v598, %v603
    %v609 = vsub.f32 %v599, %v605
    %v610 = vsub.f32 %v608, 0.9189385
    %v611 = vsub.f32 %v609, 0.9189385
    %v612 = vmul.f32 %v592, -2.0
    %v613 = vmul.f32 %v593, -2.0
    %v614 = vmax.f32 %v612, 0.0
    %v615 = vmax.f32 %v613, 0.0
    %v616 = vand.u32 2147483647, %v612
    %v617 = vand.u32 2147483647, %v613
    %v618 = vsub.f32 0.0, %v616
    %v619 = vsub.f32 0.0, %v617
    %v620 = vmul.f32 %v618, 1.442695
    %v621 = vpow.pop %v620
    %v622 = vmul.f32 %v619, 1.442695
    %v623 = vpow.pop %v622
    %v624 = vadd.f32 %v621, 1.0
    %v625 = vlog2.pop %v624
    %v626 = vmul.f32 %v625, 0.6931472
    %v627 = vmul.f32 -0.5, %v621
    %v628 = vadd.f32 %v627, 1.0
    %v629 = vmul.f32 %v628, %v621
    %v630 = vand.u32 2147483647, %v621
    %vm631 = vcmp.lt.f32.partialorder %v630, 0.0004427343
    %v632 = vsel %vm631, %v629, %v626
    %v633 = vadd.f32 %v623, 1.0
    %v634 = vlog2.pop %v633
    %v635 = vmul.f32 %v634, 0.6931472
    %v636 = vmul.f32 -0.5, %v623
    %v637 = vadd.f32 %v636, 1.0
    %v638 = vmul.f32 %v637, %v623
    %v639 = vand.u32 2147483647, %v623
    %vm640 = vcmp.lt.f32.partialorder %v639, 0.0004427343
    %v641 = vsel %vm640, %v638, %v635
    %v642 = vadd.f32 %v614, %v632
    %v643 = vadd.f32 %v615, %v641
    %v644 = vsub.f32 0.6931472, %v592
    %v645 = vsub.f32 0.6931472, %v593
    %v646 = vsub.f32 %v644, %v642
    %v647 = vsub.f32 %v645, %v643
    %v648 = vmul.f32 %v646, 2.0
    %v649 = vmul.f32 %v647, 2.0
    %v650 = vsub.f32 %v610, %v648
    %v651 = vsub.f32 %v611, %v649
    %vm652 = vcmask 64512
    %653 = vst.msk [vmem:[%s8] sm:$0xff] %vm652, %v594
    %654 = vst.msk [vmem:[%s8 + $0x8] sm:$0xff] %vm652, %v595
    %v655 = vtanh.pop %v562
    %v656 = vtanh.pop %v563
    %657 = vst.msk [vmem:[%s9] sm:$0xff] %vm652, %v655
    %658 = vst.msk [vmem:[%s9 + $0x8] sm:$0xff] %vm652, %v656
    %v659 = vsel %vm652, %v650, 0.0
    %660 = vadd.xlane.f32.xlu0 %v659
    %v661 = vpop.xlane.xlu0 %660
    %v662 = vsel %vm652, %v651, 0.0
    %663 = vadd.xlane.f32.xlu0 %v662
    %v664 = vpop.xlane.xlu0 %663
    %vm665 = vcmask 7168
    %666 = vst.msk [vmem:[%s10] sm:$0xff] %vm665, %v661
    %667 = vst.msk [vmem:[%s10 + $0x8] sm:$0xff] %vm665, %v664
    // Predicated region
    $region38: #{tpu_custom_call.1} parent=1 // pred_check
      _
    $region39: #{tpu_custom_call.1} parent=1 // pred_check_branch
      %669 = sbr.rel (0) target = $region41
    $region40: #{tpu_custom_call.1} parent=1 // pred_region
      _
    $region41: #{tpu_custom_call.1} parent=1 // pred_fallthru
      _
    // Predicated region
    $region42: #{tpu_custom_call.1} parent=1 // pred_check
      _
    $region43: #{tpu_custom_call.1} parent=1 // pred_check_branch
      %671 = sbr.rel (0) target = $region45
    $region44: #{tpu_custom_call.1} parent=1 // pred_region
      _
    $region45: #{tpu_custom_call.1} parent=1 // pred_fallthru
      _
    // Predicated region
    $region46: #{tpu_custom_call.1} parent=1 // pred_check
      _
    $region47: #{tpu_custom_call.1} parent=1 // pred_check_branch
      %673 = sbr.rel (0) target = $region49
    $region48: #{tpu_custom_call.1} parent=1 // pred_region
      _
    $region49: #{tpu_custom_call.1} parent=1 // pred_fallthru
      _
    // Predicated region
    $region50: #{tpu_custom_call.1} parent=1 // pred_check
      _
    $region51: #{tpu_custom_call.1} parent=1 // pred_check_branch
      %675 = sbr.rel (0) target = $region53
    $region52: #{tpu_custom_call.1} parent=1 // pred_region
      _
    $region53: #{tpu_custom_call.1} parent=1 // pred_fallthru
      _
    // Predicated region
    $region54: #{tpu_custom_call.1} parent=1 // pred_check
      _
    $region55: #{tpu_custom_call.1} parent=1 // pred_check_branch
      %677 = sbr.rel (0) target = $region57
    $region56: #{tpu_custom_call.1} parent=1 // pred_region
      _
    $region57: #{tpu_custom_call.1} parent=1 // pred_fallthru
      _
    // Predicated region
    $region58: #{tpu_custom_call.1} parent=1 // pred_check
      _
    $region59: #{tpu_custom_call.1} parent=1 // pred_check_branch
      %679 = sbr.rel (0) target = $region61
    $region60: #{tpu_custom_call.1} parent=1 // pred_region
      _
    $region61: #{tpu_custom_call.1} parent=1 // pred_fallthru
      _
    %680 = vsyncpa [#allocation3], 1

</llo_original>
